<compile_context>
chip_gen: v7x
topology: tpu7x:2x2x1
jax: 0.10.0
libtpu: 0.0.40
codegen_flags: <defaults>
</compile_context>

<pallas_src>
import functools

import jax
import jax.numpy as jnp
from jax.experimental import pallas as pl
from jax.experimental.pallas import tpu as pltpu


MXU_DTYPE = jnp.bfloat16   # dtype fed to the MXU; accumulation is always f32
_CPAD = 16                 # channel padding: sublane-tile aligned for f32 & bf16
_DIRECT_FEED_MIN_K = 1024  # layers with 9*Cin_p >= this skip the patches staging


def _round_up(n, m):
    return (n + m - 1) // m * m


@functools.lru_cache(maxsize=None)
def _roll_matches_jnp_roll():
    """One-time probe: True iff pltpu.roll uses jnp.roll's shift direction.

    Guards the tap-shift sign against convention differences across jax
    versions; resolved once, eagerly (returns a plain Python bool), outside jit.
    """
    def probe(x_ref, o_ref):
        o_ref[...] = pltpu.roll(x_ref[...], 1, axis=1)

    x = jax.lax.broadcasted_iota(jnp.float32, (8, 128), 1)
    y = pl.pallas_call(
        probe, out_shape=jax.ShapeDtypeStruct((8, 128), jnp.float32))(x)
    return bool(jnp.array_equal(y, jnp.roll(x, 1, axis=1)))


def _fused_multicnn_kernel(*refs, n_layers, W, jnp_roll, direct_feed_min_k):
    """One block of images (batch folded onto lanes) through all conv layers.

    refs = [x, masks, w_0..w_{L-1}, b_0..b_{L-1}, o, act_scratch, patches]
      x        (1, C0_p, N)          bf16  channel-padded, N = imgs_per_block*H*W
      masks    (8*Cmax_p, N)         bf16  0/1 multiply-masks, one block of
                                           Cmax_p identical rows per off-center tap
      w_l      (Coutp_l, 9*Cinp_l)   bf16  tap-major packed conv weights
      b_l      (Coutp_l, 1)          f32
      o        (1, Coutp_last, N)    f32
      act      (Cmax_carry, N)       bf16  current layer input (padded channels)
      patches  (9*Cmax_staged, N)    bf16  im2col staging buffer
    """
    x_ref = refs[0]
    m_ref = refs[1]
    w_refs = refs[2:2 + n_layers]
    b_refs = refs[2 + n_layers:2 + 2 * n_layers]
    o_ref = refs[2 + 2 * n_layers]
    act_ref, patches_ref = refs[2 + 2 * n_layers + 1:]

    N = x_ref.shape[2]            # folded lane axis
    cmask = m_ref.shape[0] // 8   # rows per boundary mask (== max Cin_p)

    # Static 3x3 tap table: (lane offset, roll shift, mask slot or None).
    taps = []
    mslot = 0
    for kh in range(3):
        for kw in range(3):
            dh, dw = kh - 1, kw - 1
            off = dh * W + dw                     # want tap[p] = act[p + off]
            shift = (-off) % N if jnp_roll else off % N
            if dh == 0 and dw == 0:
                taps.append((off, shift, None))   # center: identity, never masked
            else:
                taps.append((off, shift, mslot))
                mslot += 1

    def make_tap(src, tap):
        off, shift, slot = tap
        if off == 0:
            return src
        cin_p = src.shape[0]
        rolled = pltpu.roll(src, shift, axis=1)   # XLU lane roll (bf16)
        # 0/1 bf16 multiply-mask == the conv zero padding; it also zeroes every
        # roll-wraparound / cross-image position.  Aligned slice (cin_p % 16 == 0).
        return rolled * m_ref[slot * cmask:slot * cmask + cin_p, :]

    for l in range(n_layers):
        cout_p, k9 = w_refs[l].shape
        cin_p = k9 // 9

        # Layer input (bf16, channel-padded).  Layer 0 reads the input block
        # directly -- no copy-in to the activation scratch.
        src = x_ref[0] if l == 0 else act_ref[0:cin_p, :]

        if k9 >= direct_feed_min_k:
            # Shift-and-accumulate: 9 MXU matmuls fed straight from the rolled
            # taps; skips 9*cin_p rows of bf16 stores + loads through patches.
            w_full = w_refs[l][...]
            acc = None
            for t, tap in enumerate(taps):
                part = jnp.dot(w_full[:, t * cin_p:(t + 1) * cin_p],
                               make_tap(src, tap),
                               preferred_element_type=jnp.float32)
                acc = part if acc is None else acc + part
            out = acc + b_refs[l][...]            # (Cout_p, 1) broadcast over lanes
        else:
            # im2col staging: rows [t*cin_p, (t+1)*cin_p) hold tap t (bf16,
            # tile-aligned stores), then one big-K MXU matmul with f32 acc.
            for t, tap in enumerate(taps):
                patches_ref[t * cin_p:(t + 1) * cin_p, :] = make_tap(src, tap)
            out = jnp.dot(w_refs[l][...], patches_ref[0:k9, :],
                          preferred_element_type=jnp.float32) + b_refs[l][...]

        if l == n_layers - 1:
            o_ref[0] = jnp.maximum(out, 0.0).astype(o_ref.dtype)   # final ReLU
        else:
            # Single f32->bf16 cast per layer; padded rows remain exactly 0.
            act_ref[0:cout_p, :] = out.astype(act_ref.dtype)


def _prep_layer(w_hwio, bias, cin_p, cout_p):
    """Pack (3,3,Cin,Cout) HWIO weights as (Cout_p, 9*Cin_p), tap-major columns
    (column = (kh*3+kw)*Cin_p + cin).  Padded rows/columns (and padded bias rows)
    are zero so padded activation channels stay exactly zero layer to layer."""
    cin, cout = w_hwio.shape[2], w_hwio.shape[3]
    w_pad = jnp.zeros((3, 3, cin_p, cout_p), jnp.float32)
    w_pad = w_pad.at[:, :, :cin, :cout].set(w_hwio)
    w_mat = w_pad.reshape(9 * cin_p, cout_p).T              # (Cout_p, 9*Cin_p)
    b_pad = jnp.zeros((cout_p, 1), jnp.float32).at[:cout, 0].set(bias)
    return w_mat.astype(MXU_DTYPE), b_pad


def _build_masks(H, W, imgs_per_block, cmax, dtype):
    """8 off-center-tap boundary masks as 0/1 multiply-masks, pre-broadcast to
    cmax channel rows and flattened to (8*cmax, N).  Column position is taken
    modulo H*W so the same mask handles every image folded onto the lane axis."""
    HW = H * W
    N = imgs_per_block * HW
    pos = jnp.arange(N, dtype=jnp.int32) % HW
    row, col = pos // W, pos % W
    blocks = []
    for kh in range(3):
        for kw in range(3):
            dh, dw = kh - 1, kw - 1
            if dh == 0 and dw == 0:
                continue
            m = ((row + dh >= 0) & (row + dh < H) &
                 (col + dw >= 0) & (col + dw < W))
            blocks.append(jnp.broadcast_to(m[None, :], (cmax, N)))
    return jnp.concatenate(blocks, axis=0).astype(dtype)    # (8*cmax, N)


def multi_cnn_forward(x_nchw, params, *, num_blocks=None, roll_matches_jnp=None):
    """Reproduces multiCNN.forward (conv1..conv6, 3x3/s1/p1, then ReLU), NCHW."""
    if roll_matches_jnp is None:
        roll_matches_jnp = _roll_matches_jnp_roll()

    B, c0, H, W = x_nchw.shape
    HW = H * W
    n_layers = len(params)

    # Grid blocks: 2 for even B (one per v7x TensorCore), else 1; the batch
    # within a block is folded onto the lane axis -> N multiple of 256.
    if num_blocks is None:
        num_blocks = 2 if (B >= 2 and B % 2 == 0) else 1
    assert B % num_blocks == 0
    ipb = B // num_blocks
    N = ipb * HW

    # Lane-dense bf16 input: (num_blocks, C0_p, ipb*HW), channels zero-padded.
    c0_p = _round_up(c0, _CPAD)
    x = x_nchw.astype(jnp.float32).reshape(num_blocks, ipb, c0, HW)
    x = jnp.pad(x, ((0, 0), (0, 0), (0, c0_p - c0), (0, 0)))
    x = jnp.transpose(x, (0, 2, 1, 3)).reshape(num_blocks, c0_p, N)
    x = x.astype(MXU_DTYPE)

    # Pack weights/biases (host side, tiny).
    w_mats, b_vecs, cin_ps, cout_ps = [], [], [], []
    cin_p = c0_p
    for w, b in params:
        cout_p = _round_up(w.shape[3], _CPAD)
        wm, bp = _prep_layer(w, b, cin_p, cout_p)
        w_mats.append(wm)
        b_vecs.append(bp)
        cin_ps.append(cin_p)
        cout_ps.append(cout_p)
        cin_p = cout_p
    cout_last = params[-1][0].shape[3]
    cout_last_p = cout_ps[-1]

    cmax_carry = max(cout_ps[:-1]) if n_layers > 1 else _CPAD
    staged = [c for c, k in zip(cin_ps, cin_ps) if 9 * c < _DIRECT_FEED_MIN_K]
    cmax_staged = max(staged) if staged else _CPAD
    cmax_mask = max(cin_ps)

    masks = _build_masks(H, W, ipb, cmax_mask, MXU_DTYPE)    # (8*cmax_mask, N)

    kern = functools.partial(_fused_multicnn_kernel, n_layers=n_layers, W=W,
                             jnp_roll=bool(roll_matches_jnp),
                             direct_feed_min_k=_DIRECT_FEED_MIN_K)

    in_specs = [pl.BlockSpec((1, c0_p, N), lambda i: (i, 0, 0)),
                pl.BlockSpec(masks.shape, lambda i: (0, 0))]
    in_specs += [pl.BlockSpec(wm.shape, lambda i: (0, 0)) for wm in w_mats]
    in_specs += [pl.BlockSpec(bp.shape, lambda i: (0, 0)) for bp in b_vecs]

    out = pl.pallas_call(
        kern,
        out_shape=jax.ShapeDtypeStruct((num_blocks, cout_last_p, N), jnp.float32),
        grid_spec=pltpu.PrefetchScalarGridSpec(
            num_scalar_prefetch=0,
            grid=(num_blocks,),
            in_specs=in_specs,
            out_specs=pl.BlockSpec((1, cout_last_p, N), lambda i: (i, 0, 0)),
            scratch_shapes=[
                pltpu.VMEM((cmax_carry, N), MXU_DTYPE),       # bf16 act carry
                pltpu.VMEM((9 * cmax_staged, N), MXU_DTYPE),  # bf16 im2col patches
            ],
        ),
        compiler_params=pltpu.CompilerParams(
            dimension_semantics=("parallel",)),
    )(x, masks, *w_mats, *b_vecs)

    # Unfold batch from lanes, drop channel padding, restore NCHW.
    out = out.reshape(num_blocks, cout_last_p, ipb, HW)
    out = jnp.transpose(out, (0, 2, 1, 3)).reshape(B, cout_last_p, HW)
    return out[:, :cout_last, :].reshape(B, cout_last, H, W)


def reference_forward(x_nchw, params):
    """Pure-XLA f32 (HIGHEST precision) reference for multiCNN.forward."""
    out = x_nchw
    for w, b in params:
        out = jax.lax.conv_general_dilated(
            out, w, window_strides=(1, 1), padding="SAME",
            dimension_numbers=("NCHW", "HWIO", "NCHW"),
            precision=jax.lax.Precision.HIGHEST)
        out = out + b.reshape(1, -1, 1, 1)
    return jnp.maximum(out, 0.0)


def init_params(key, chans):
    """Deterministic PyTorch-like Conv2d init (uniform +-1/sqrt(fan_in)), HWIO."""
    params = []
    for i in range(len(chans) - 1):
        cin, cout = chans[i], chans[i + 1]
        key, kw_, kb_ = jax.random.split(key, 3)
        fan_in = cin * 3 * 3
        bound = 1.0 / float(fan_in) ** 0.5
        w = jax.random.uniform(kw_, (3, 3, cin, cout), jnp.float32,
                               minval=-bound, maxval=bound)
        b = jax.random.uniform(kb_, (cout,), jnp.float32,
                               minval=-bound, maxval=bound)
        params.append((w, b))
    return params


if __name__ == "__main__":
    B, H, W = 2, 16, 16
    chans = [3, 18, 32, 120, 64, 10, 1]            # conv1..conv6 channel chain

    key = jax.random.PRNGKey(0)
    key, kx = jax.random.split(key)
    params = init_params(key, chans)
    x = jax.random.normal(kx, (B, chans[0], H, W), jnp.float32)   # NCHW input

    roll_ok = _roll_matches_jnp_roll()             # resolve probe outside jit
    fwd = jax.jit(functools.partial(multi_cnn_forward, roll_matches_jnp=roll_ok))
    out = jax.block_until_ready(fwd(x, params))

    assert out.shape == (B, 1, H, W), out.shape
    assert bool(jnp.all(out >= 0.0))               # final ReLU
    assert bool(jnp.all(jnp.isfinite(out)))

    # Numerical check vs. XLA reference (bf16 MXU inputs, f32 accumulation).
    ref = reference_forward(x, params)
    max_err = float(jnp.max(jnp.abs(out - ref)))
    assert max_err < 3e-2, f"max abs error {max_err}"

    print("KERNEL_OK")
</pallas_src>

<mosaic_0001>
module attributes {stable_mosaic.version = 11 : i64} {
  func.func @probe(%arg0: memref<8x128xf32, #tpu.memory_space<vmem>>, %arg1: memref<8x128xf32, #tpu.memory_space<vmem>>) attributes {dimension_semantics = [], scalar_prefetch = 0 : i64, scratch_operands = 0 : i64, tpu.core_type = #tpu.core_type<tc>} {
    %c0 = arith.constant 0 : index
    %c0_0 = arith.constant 0 : index
    %0 = vector.load %arg0[%c0, %c0_0] : memref<8x128xf32, #tpu.memory_space<vmem>>, vector<8x128xf32>
    %c1_i32 = arith.constant 1 : i32
    %1 = tpu.dynamic_rotate %0 by %c1_i32 dim 1 : vector<8x128xf32>, i32 -> vector<8x128xf32>
    %c0_1 = arith.constant 0 : index
    %c0_2 = arith.constant 0 : index
    %2 = vector.load %arg1[%c0_1, %c0_2] : memref<8x128xf32, #tpu.memory_space<vmem>>, vector<8x128xf32>
    tpu.vector_store %arg1[%c0_1, %c0_2], %1 {strides = array<i32>} : memref<8x128xf32, #tpu.memory_space<vmem>>, vector<8x128xf32>,
    return
  }
}

</mosaic_0001>

<llo_original>
// kernel: tpu_custom_call.1
$region0: #{tpu_custom_call.1}
  #allocation0 [shape = 'u32[]', space=smem, size = 0x4, offset = 0x4, fixed_abs, tag = 'smem constant byte address 0x4 - core index']
  #allocation1 [shape = 'u32[144,128]{1,0:T(1,128)}', space=vmem, size = 0x12000, scoped, tag = 'internal scratch']
  %s0 = inlined_call_operand.hbm [shape: f32[8,128], index: 0, kind: input, shape index: {}]
  %s1 = inlined_call_operand.hbm [shape: f32[8,128], index: 1, kind: output, shape index: {}]
  %s2 = sld [smem:[#allocation0]]
  $region18: #{tpu_custom_call.1} parent=0
    _
  %s4 = ssub.s32 1, %s2
  %s5 = scalar_select 0, %s4, %s2
  $region1: #{tpu_custom_call.1} parent=0
    #allocation2 [shape = 'u8[4096]{0}', space=vmem, size = 0x1000, scoped, tag = 'input window, operand 0, single buffered']
    #allocation3 [shape = 's32[1]{0}', space=sflag, size = 0x4, scoped, tag = 'scoped memory for tpu_custom_call.1']
    #allocation4 [shape = 's32[1]{0}', space=sflag, size = 0x4, scoped, tag = 'scoped memory for tpu_custom_call.1']
    #allocation5 [shape = 'u8[4096]{0}', space=vmem, size = 0x1000, scoped, tag = 'output window, operand 0, single buffered']
    %6 = vsyncpa [#allocation3], 0
    %7 = vsyncpa [#allocation4], 0
    // Predicated region
    $region2: #{tpu_custom_call.1} parent=1 // pred_check
      _
    $region3: #{tpu_custom_call.1} parent=1 // pred_check_branch
      %9 = sbr.rel (0) target = $region5
    $region4: #{tpu_custom_call.1} parent=1 // pred_region
      %s11 = ssub.s32 128, 128
      %12 = vsyncadd [#allocation3], %s11
      %s14 = sshll.u32 [#allocation2], 4
      %s15 = int_to_ptr.vmem [resolvable:$true] %s14
      %17 = dma.hbm_to_vmem [thread:$0]  %s0, 128, %s15, [#allocation3]
    $region5: #{tpu_custom_call.1} parent=1 // pred_fallthru
      _
    // Predicated region
    $region6: #{tpu_custom_call.1} parent=1 // pred_check
      _
    $region7: #{tpu_custom_call.1} parent=1 // pred_check_branch
      %19 = sbr.rel (0) target = $region9
    $region8: #{tpu_custom_call.1} parent=1 // pred_region
      %20 = dma.done [#allocation3], 128
    $region9: #{tpu_custom_call.1} parent=1 // pred_fallthru
      _
    %v21 = vld [vmem:[#allocation2] sm:$0xff]
    %22 = vrot.lane.b32.xlu0 %v21, 1
    %v23 = vpop.permute.xlu0 %22
    %24 = vst [vmem:[#allocation5] sm:$0xff] %v23
    // Predicated region
    $region10: #{tpu_custom_call.1} parent=1 // pred_check
      _
    $region11: #{tpu_custom_call.1} parent=1 // pred_check_branch
      %26 = sbr.rel (0) target = $region13
    $region12: #{tpu_custom_call.1} parent=1 // pred_region
      %s28 = ssub.s32 128, 128
      %29 = vsyncadd [#allocation4], %s28
      %s31 = sshll.u32 [#allocation5], 4
      %s32 = int_to_ptr.vmem [resolvable:$true] %s31
      %34 = dma.vmem_to_hbm [thread:$0]  %s32, 128, %s1, [#allocation4]
    $region13: #{tpu_custom_call.1} parent=1 // pred_fallthru
      _
    // Predicated region
    $region14: #{tpu_custom_call.1} parent=1 // pred_check
      _
    $region15: #{tpu_custom_call.1} parent=1 // pred_check_branch
      %36 = sbr.rel (0) target = $region17
    $region16: #{tpu_custom_call.1} parent=1 // pred_region
      %37 = dma.done [#allocation4], 128
    $region17: #{tpu_custom_call.1} parent=1 // pred_fallthru
      _
    %38 = vsyncpa [#allocation3], 1
    %39 = vsyncpa [#allocation4], 1

</llo_original>
